<compile_context>
chip_gen: v7x
topology: tpu7x:2x2x1
jax: 0.10.0
libtpu: 0.0.40
codegen_flags: <defaults>
</compile_context>

<pallas_src>
import jax
import jax.numpy as jnp
from jax.experimental import pallas as pl
from jax.experimental.pallas import tpu as pltpu

LANE = 128  # vreg lane width (batch tile axis)
SUB = 8     # sublane count used for the narrow input/output slabs


def mlp_kernel(x_ref, w1_ref, b1_ref, w2_ref, b2_ref, w3_ref, b3_ref, o_ref):
    """One batch tile: fused 3-layer MLP, batch on lanes, features on sublanes."""
    x = x_ref[...]  # [8, TB]; rows 0..1 carry the real input features.

    # Layer 1 (true K=2): two outer-product FMAs on the VPU — cheaper than a
    # (mostly-zero) K=128 MXU pass.  w1 is torch-layout [out, in] padded.
    h1 = (w1_ref[:, 0:1] * x[0:1, :]
          + w1_ref[:, 1:2] * x[1:2, :]
          + b1_ref[...])                                  # [128, TB]
    h1 = jnp.maximum(h1, 0.0)

    # Layers 2 and 3: K=128 MXU matmuls (weights already [out, in]); padded
    # weight rows/cols and bias rows are exactly zero, so padded sublanes of
    # h2/out stay zero.
    h2 = jnp.dot(w2_ref[...], h1, preferred_element_type=jnp.float32) + b2_ref[...]
    h2 = jnp.maximum(h2, 0.0)                             # [128, TB]
    out = jnp.dot(w3_ref[...], h2, preferred_element_type=jnp.float32) + b3_ref[...]  # [8, TB]

    o_ref[...] = out.astype(o_ref.dtype)  # full-lane, unmasked stores


def _round_up(n, m):
    return (n + m - 1) // m * m


def neural_net_forward(x, packed_params, *, block_b=512):
    """x: [B, 2] float32 -> [B, 1] float32 (same semantics as the PyTorch module)."""
    w1, b1, w2, b2, w3, b3 = packed_params
    B, in_features = x.shape

    # Batch tile: multiple of 128 (lane width), capped at block_b so the
    # per-step working set (x/out tiles double-buffered + resident weights +
    # [128, TB] intermediates) stays well under the scoped-VMEM default.
    TB = _round_up(min(block_b, _round_up(B, LANE)), LANE)
    B_pad = _round_up(B, TB)

    # Transposed, zero-padded input: [8, B_pad]; rows 0..in_features-1 real.
    x_t = jnp.zeros((SUB, B_pad), jnp.float32).at[:in_features, :B].set(x.T)

    grid = (B_pad // TB,)
    flops = 2 * B * (2 * 10 + 10 * 10 + 10 * 1)
    bytes_accessed = (2 * SUB * B_pad * 4
                      + sum(int(p.size) * 4 for p in packed_params))

    out_pad = pl.pallas_call(
        mlp_kernel,
        out_shape=jax.ShapeDtypeStruct((SUB, B_pad), jnp.float32),
        grid=grid,
        in_specs=[
            pl.BlockSpec((SUB, TB), lambda i: (0, i)),     # x_t: tiled over batch lanes
            pl.BlockSpec((LANE, LANE), lambda i: (0, 0)),  # w1: VMEM-resident
            pl.BlockSpec((LANE, 1), lambda i: (0, 0)),     # b1
            pl.BlockSpec((LANE, LANE), lambda i: (0, 0)),  # w2
            pl.BlockSpec((LANE, 1), lambda i: (0, 0)),     # b2
            pl.BlockSpec((SUB, LANE), lambda i: (0, 0)),   # w3
            pl.BlockSpec((SUB, 1), lambda i: (0, 0)),      # b3
        ],
        out_specs=pl.BlockSpec((SUB, TB), lambda i: (0, i)),
        compiler_params=pltpu.CompilerParams(
            dimension_semantics=("parallel",),  # batch tiles across TCs (v7x)
        ),
        cost_estimate=pl.CostEstimate(
            flops=flops, transcendentals=0, bytes_accessed=bytes_accessed),
    )(x_t, w1, b1, w2, b2, w3, b3)

    # Row 0 of the padded, transposed output is the real nn.Linear(10, 1) result.
    return out_pad[0, :B][:, None]


def init_params(key):
    """PyTorch nn.Linear-style init; weights stored [out, in], biases [out]."""
    sizes = [(2, 10), (10, 10), (10, 1)]
    params = []
    for fan_in, fan_out in sizes:
        kw, kb, key = jax.random.split(key, 3)
        bound = 1.0 / jnp.sqrt(float(fan_in))
        w = jax.random.uniform(kw, (fan_out, fan_in), jnp.float32, -bound, bound)
        b = jax.random.uniform(kb, (fan_out,), jnp.float32, -bound, bound)
        params.extend([w, b])
    return tuple(params)


def pack_params(params):
    """Zero-pad torch-layout weights/biases to clean (8,128)-tileable slabs.

    w1,w2 -> [128,128], w3 -> [8,128]; biases -> [128,1]/[8,1] columns.
    Padded entries are exactly zero, so padded hidden/output sublanes stay
    zero through ReLU and the matmuls.
    """
    w1, b1, w2, b2, w3, b3 = params

    def pad_w(w, rows):
        return jnp.zeros((rows, LANE), jnp.float32).at[: w.shape[0], : w.shape[1]].set(w)

    def pad_b(b, rows):
        return jnp.zeros((rows, 1), jnp.float32).at[: b.shape[0], 0].set(b)

    return (pad_w(w1, LANE), pad_b(b1, LANE),
            pad_w(w2, LANE), pad_b(b2, LANE),
            pad_w(w3, SUB), pad_b(b3, SUB))


if __name__ == "__main__":
    key = jax.random.PRNGKey(0)
    k_x, k_p = jax.random.split(key)

    batch = 8
    x = jax.random.normal(k_x, (batch, 2), dtype=jnp.float32)
    params = init_params(k_p)
    packed = pack_params(params)

    y = neural_net_forward(x, packed)
    jax.block_until_ready(y)

    # Sanity check against a plain-JAX reference of the same forward pass
    # (torch convention: y = x @ W.T + b).
    w1, b1, w2, b2, w3, b3 = params
    ref = jnp.maximum(x @ w1.T + b1, 0.0)
    ref = jnp.maximum(ref @ w2.T + b2, 0.0)
    ref = ref @ w3.T + b3
    assert y.shape == (batch, 1)
    assert jnp.allclose(y, ref, atol=1e-5, rtol=1e-5)

    print("KERNEL_OK")
</pallas_src>

<mosaic_0001>
module attributes {stable_mosaic.version = 11 : i64} {
  func.func @mlp_kernel(%arg0: i32, %arg1: memref<8x128xf32, #tpu.memory_space<vmem>>, %arg2: memref<128x128xf32, #tpu.memory_space<vmem>>, %arg3: memref<128x1xf32, #tpu.memory_space<vmem>>, %arg4: memref<128x128xf32, #tpu.memory_space<vmem>>, %arg5: memref<128x1xf32, #tpu.memory_space<vmem>>, %arg6: memref<8x128xf32, #tpu.memory_space<vmem>>, %arg7: memref<8x1xf32, #tpu.memory_space<vmem>>, %arg8: memref<8x128xf32, #tpu.memory_space<vmem>>) attributes {dimension_semantics = [#tpu.dimension_semantics<parallel>], iteration_bounds = array<i64: 1>, scalar_prefetch = 0 : i64, scratch_operands = 0 : i64, tpu.core_type = #tpu.core_type<tc>, window_params = [{transform_indices = @transform_0, window_bounds = array<i64: 8, 128>}, {pipeline_mode = #tpu.pipeline_mode<synchronous>, transform_indices = @transform_1, window_bounds = array<i64: 128, 128>}, {pipeline_mode = #tpu.pipeline_mode<synchronous>, transform_indices = @transform_2, window_bounds = array<i64: 128, 1>}, {pipeline_mode = #tpu.pipeline_mode<synchronous>, transform_indices = @transform_3, window_bounds = array<i64: 128, 128>}, {pipeline_mode = #tpu.pipeline_mode<synchronous>, transform_indices = @transform_4, window_bounds = array<i64: 128, 1>}, {pipeline_mode = #tpu.pipeline_mode<synchronous>, transform_indices = @transform_5, window_bounds = array<i64: 8, 128>}, {pipeline_mode = #tpu.pipeline_mode<synchronous>, transform_indices = @transform_6, window_bounds = array<i64: 8, 1>}, {transform_indices = @transform_7, window_bounds = array<i64: 8, 128>}]} {
    %c0 = arith.constant 0 : index
    %c0_0 = arith.constant 0 : index
    %0 = vector.load %arg1[%c0, %c0_0] : memref<8x128xf32, #tpu.memory_space<vmem>>, vector<8x128xf32>
    %c0_1 = arith.constant 0 : index
    %c0_2 = arith.constant 0 : index
    %1 = vector.load %arg2[%c0_1, %c0_2] : memref<128x128xf32, #tpu.memory_space<vmem>>, vector<128x1xf32>
    %2 = vector.extract_strided_slice %0 {offsets = [0, 0], sizes = [1, 128], strides = [1, 1]} : vector<8x128xf32> to vector<1x128xf32>
    %3 = vector.broadcast %1 : vector<128x1xf32> to vector<128x128xf32>
    %4 = vector.broadcast %2 : vector<1x128xf32> to vector<128x128xf32>
    %5 = arith.mulf %3, %4 : vector<128x128xf32>
    %c0_3 = arith.constant 0 : index
    %c1 = arith.constant 1 : index
    %6 = vector.load %arg2[%c0_3, %c1] : memref<128x128xf32, #tpu.memory_space<vmem>>, vector<128x1xf32>
    %7 = vector.extract_strided_slice %0 {offsets = [1, 0], sizes = [1, 128], strides = [1, 1]} : vector<8x128xf32> to vector<1x128xf32>
    %8 = vector.broadcast %6 : vector<128x1xf32> to vector<128x128xf32>
    %9 = vector.broadcast %7 : vector<1x128xf32> to vector<128x128xf32>
    %10 = arith.mulf %8, %9 : vector<128x128xf32>
    %11 = arith.addf %5, %10 : vector<128x128xf32>
    %c0_4 = arith.constant 0 : index
    %c0_5 = arith.constant 0 : index
    %12 = vector.load %arg3[%c0_4, %c0_5] : memref<128x1xf32, #tpu.memory_space<vmem>>, vector<128x1xf32>
    %13 = vector.broadcast %12 : vector<128x1xf32> to vector<128x128xf32>
    %14 = arith.addf %11, %13 : vector<128x128xf32>
    %cst = arith.constant 0.000000e+00 : f32
    %15 = vector.broadcast %cst : f32 to vector<128x128xf32>
    %16 = arith.maximumf %14, %15 : vector<128x128xf32>
    %c0_6 = arith.constant 0 : index
    %c0_7 = arith.constant 0 : index
    %17 = vector.load %arg4[%c0_6, %c0_7] : memref<128x128xf32, #tpu.memory_space<vmem>>, vector<128x128xf32>
    %cst_8 = arith.constant dense<0.000000e+00> : vector<128x128xf32>
    %18 = tpu.matmul %17, %16, %cst_8 {dimension_numbers = #tpu.dot_dimension_numbers<[1], [0], [0], [1], [0, 0, 1, 1], [], []>} : vector<128x128xf32>, vector<128x128xf32>, vector<128x128xf32> -> vector<128x128xf32>
    %c0_9 = arith.constant 0 : index
    %c0_10 = arith.constant 0 : index
    %19 = vector.load %arg5[%c0_9, %c0_10] : memref<128x1xf32, #tpu.memory_space<vmem>>, vector<128x1xf32>
    %20 = vector.broadcast %19 : vector<128x1xf32> to vector<128x128xf32>
    %21 = arith.addf %18, %20 : vector<128x128xf32>
    %cst_11 = arith.constant 0.000000e+00 : f32
    %22 = vector.broadcast %cst_11 : f32 to vector<128x128xf32>
    %23 = arith.maximumf %21, %22 : vector<128x128xf32>
    %c0_12 = arith.constant 0 : index
    %c0_13 = arith.constant 0 : index
    %24 = vector.load %arg6[%c0_12, %c0_13] : memref<8x128xf32, #tpu.memory_space<vmem>>, vector<8x128xf32>
    %cst_14 = arith.constant dense<0.000000e+00> : vector<8x128xf32>
    %25 = tpu.matmul %24, %23, %cst_14 {dimension_numbers = #tpu.dot_dimension_numbers<[1], [0], [0], [1], [0, 0, 1, 1], [], []>} : vector<8x128xf32>, vector<128x128xf32>, vector<8x128xf32> -> vector<8x128xf32>
    %c0_15 = arith.constant 0 : index
    %c0_16 = arith.constant 0 : index
    %26 = vector.load %arg7[%c0_15, %c0_16] : memref<8x1xf32, #tpu.memory_space<vmem>>, vector<8x1xf32>
    %27 = vector.broadcast %26 : vector<8x1xf32> to vector<8x128xf32>
    %28 = arith.addf %25, %27 : vector<8x128xf32>
    %c0_17 = arith.constant 0 : index
    %c0_18 = arith.constant 0 : index
    %29 = vector.load %arg8[%c0_17, %c0_18] : memref<8x128xf32, #tpu.memory_space<vmem>>, vector<8x128xf32>
    tpu.vector_store %arg8[%c0_17, %c0_18], %28 {strides = array<i32>} : memref<8x128xf32, #tpu.memory_space<vmem>>, vector<8x128xf32>,
    return
  }
  func.func @transform_0(%arg0: i32) -> (i32, i32) {
    %c0_i32 = arith.constant 0 : i32
    %c0_i32_0 = arith.constant 0 : i32
    return %c0_i32, %arg0 : i32, i32
  }
  func.func @transform_1(%arg0: i32) -> (i32, i32) {
    %c0_i32 = arith.constant 0 : i32
    %c0_i32_0 = arith.constant 0 : i32
    %c0_i32_1 = arith.constant 0 : i32
    return %c0_i32, %c0_i32_0 : i32, i32
  }
  func.func @transform_2(%arg0: i32) -> (i32, i32) {
    %c0_i32 = arith.constant 0 : i32
    %c0_i32_0 = arith.constant 0 : i32
    %c0_i32_1 = arith.constant 0 : i32
    return %c0_i32, %c0_i32_0 : i32, i32
  }
  func.func @transform_3(%arg0: i32) -> (i32, i32) {
    %c0_i32 = arith.constant 0 : i32
    %c0_i32_0 = arith.constant 0 : i32
    %c0_i32_1 = arith.constant 0 : i32
    return %c0_i32, %c0_i32_0 : i32, i32
  }
  func.func @transform_4(%arg0: i32) -> (i32, i32) {
    %c0_i32 = arith.constant 0 : i32
    %c0_i32_0 = arith.constant 0 : i32
    %c0_i32_1 = arith.constant 0 : i32
    return %c0_i32, %c0_i32_0 : i32, i32
  }
  func.func @transform_5(%arg0: i32) -> (i32, i32) {
    %c0_i32 = arith.constant 0 : i32
    %c0_i32_0 = arith.constant 0 : i32
    %c0_i32_1 = arith.constant 0 : i32
    return %c0_i32, %c0_i32_0 : i32, i32
  }
  func.func @transform_6(%arg0: i32) -> (i32, i32) {
    %c0_i32 = arith.constant 0 : i32
    %c0_i32_0 = arith.constant 0 : i32
    %c0_i32_1 = arith.constant 0 : i32
    return %c0_i32, %c0_i32_0 : i32, i32
  }
  func.func @transform_7(%arg0: i32) -> (i32, i32) {
    %c0_i32 = arith.constant 0 : i32
    %c0_i32_0 = arith.constant 0 : i32
    return %c0_i32, %arg0 : i32, i32
  }
}

</mosaic_0001>

<llo_original>
// kernel: tpu_custom_call.1
$region0: #{tpu_custom_call.1}
  #allocation0 [shape = 'u32[]', space=smem, size = 0x4, offset = 0x4, fixed_abs, tag = 'smem constant byte address 0x4 - core index']
  #allocation1 [shape = 'u32[144,128]{1,0:T(1,128)}', space=vmem, size = 0x12000, scoped, tag = 'internal scratch']
  %s0 = inlined_call_operand.vmem [shape: f32[8,128], index: 0, kind: input, shape index: {}]
  %s1 = inlined_call_operand.vmem [shape: f32[128,128], index: 1, kind: input, shape index: {}]
  %s2 = inlined_call_operand.vmem [shape: f32[128,1], index: 2, kind: input, shape index: {}]
  %s3 = inlined_call_operand.vmem [shape: f32[128,128], index: 3, kind: input, shape index: {}]
  %s4 = inlined_call_operand.vmem [shape: f32[128,1], index: 4, kind: input, shape index: {}]
  %s5 = inlined_call_operand.vmem [shape: f32[8,128], index: 5, kind: input, shape index: {}]
  %s6 = inlined_call_operand.vmem [shape: f32[8,1], index: 6, kind: input, shape index: {}]
  %s7 = inlined_call_operand.hbm [shape: f32[8,128], index: 7, kind: output, shape index: {}]
  %s8 = sld [smem:[#allocation0]]
  $region38: #{tpu_custom_call.1} parent=0
    _
  %s10 = ssub.s32 1, %s8
  %s11 = scalar_select 0, %s10, %s8
  $region1: #{tpu_custom_call.1} parent=0
    #allocation2 [shape = 'u8[4096]{0}', space=vmem, size = 0x1000, scoped, tag = 'output window, operand 0, single buffered']
    #allocation3 [shape = 's32[1]{0}', space=sflag, size = 0x4, scoped, tag = 'scoped memory for tpu_custom_call.1']
    %12 = vsyncpa [#allocation3], 0
    // Predicated region
    $region2: #{tpu_custom_call.1} parent=1 // pred_check
      _
    $region3: #{tpu_custom_call.1} parent=1 // pred_check_branch
      %14 = sbr.rel (0) target = $region5
    $region4: #{tpu_custom_call.1} parent=1 // pred_region
      _
    $region5: #{tpu_custom_call.1} parent=1 // pred_fallthru
      _
    // Predicated region
    $region6: #{tpu_custom_call.1} parent=1 // pred_check
      _
    $region7: #{tpu_custom_call.1} parent=1 // pred_check_branch
      %16 = sbr.rel (0) target = $region9
    $region8: #{tpu_custom_call.1} parent=1 // pred_region
      _
    $region9: #{tpu_custom_call.1} parent=1 // pred_fallthru
      _
    // Predicated region
    $region10: #{tpu_custom_call.1} parent=1 // pred_check
      _
    $region11: #{tpu_custom_call.1} parent=1 // pred_check_branch
      %18 = sbr.rel (0) target = $region13
    $region12: #{tpu_custom_call.1} parent=1 // pred_region
      _
    $region13: #{tpu_custom_call.1} parent=1 // pred_fallthru
      _
    // Predicated region
    $region14: #{tpu_custom_call.1} parent=1 // pred_check
      _
    $region15: #{tpu_custom_call.1} parent=1 // pred_check_branch
      %20 = sbr.rel (0) target = $region17
    $region16: #{tpu_custom_call.1} parent=1 // pred_region
      _
    $region17: #{tpu_custom_call.1} parent=1 // pred_fallthru
      _
    // Predicated region
    $region18: #{tpu_custom_call.1} parent=1 // pred_check
      _
    $region19: #{tpu_custom_call.1} parent=1 // pred_check_branch
      %22 = sbr.rel (0) target = $region21
    $region20: #{tpu_custom_call.1} parent=1 // pred_region
      _
    $region21: #{tpu_custom_call.1} parent=1 // pred_fallthru
      _
    // Predicated region
    $region22: #{tpu_custom_call.1} parent=1 // pred_check
      _
    $region23: #{tpu_custom_call.1} parent=1 // pred_check_branch
      %24 = sbr.rel (0) target = $region25
    $region24: #{tpu_custom_call.1} parent=1 // pred_region
      _
    $region25: #{tpu_custom_call.1} parent=1 // pred_fallthru
      _
    // Predicated region
    $region26: #{tpu_custom_call.1} parent=1 // pred_check
      _
    $region27: #{tpu_custom_call.1} parent=1 // pred_check_branch
      %26 = sbr.rel (0) target = $region29
    $region28: #{tpu_custom_call.1} parent=1 // pred_region
      _
    $region29: #{tpu_custom_call.1} parent=1 // pred_fallthru
      _
    %v27 = vld [vmem:[%s0] sm:$0xff]
    %v28 = vld [vmem:[%s1] sm:$0xff]
    %v29 = vld [vmem:[%s1 + $0x8] sm:$0xff]
    %v30 = vld [vmem:[%s1 + $0x10] sm:$0xff]
    %v31 = vld [vmem:[%s1 + $0x18] sm:$0xff]
    %v32 = vld [vmem:[%s1 + $0x20] sm:$0xff]
    %v33 = vld [vmem:[%s1 + $0x28] sm:$0xff]
    %v34 = vld [vmem:[%s1 + $0x30] sm:$0xff]
    %v35 = vld [vmem:[%s1 + $0x38] sm:$0xff]
    %v36 = vld [vmem:[%s1 + $0x40] sm:$0xff]
    %v37 = vld [vmem:[%s1 + $0x48] sm:$0xff]
    %v38 = vld [vmem:[%s1 + $0x50] sm:$0xff]
    %v39 = vld [vmem:[%s1 + $0x58] sm:$0xff]
    %v40 = vld [vmem:[%s1 + $0x60] sm:$0xff]
    %v41 = vld [vmem:[%s1 + $0x68] sm:$0xff]
    %v42 = vld [vmem:[%s1 + $0x70] sm:$0xff]
    %v43 = vld [vmem:[%s1 + $0x78] sm:$0xff]
    %45 = vset.pattern.permute.xlu0 0
    %46 = vperm.xlu0 %45, %v28
    %v47 = vpop.permute.xlu0 %46
    %50 = vset.pattern.permute.xlu0 0
    %51 = vperm.xlu0 %50, %v29
    %v52 = vpop.permute.xlu0 %51
    %55 = vset.pattern.permute.xlu0 0
    %56 = vperm.xlu0 %55, %v30
    %v57 = vpop.permute.xlu0 %56
    %60 = vset.pattern.permute.xlu0 0
    %61 = vperm.xlu0 %60, %v31
    %v62 = vpop.permute.xlu0 %61
    %65 = vset.pattern.permute.xlu0 0
    %66 = vperm.xlu0 %65, %v32
    %v67 = vpop.permute.xlu0 %66
    %70 = vset.pattern.permute.xlu0 0
    %71 = vperm.xlu0 %70, %v33
    %v72 = vpop.permute.xlu0 %71
    %75 = vset.pattern.permute.xlu0 0
    %76 = vperm.xlu0 %75, %v34
    %v77 = vpop.permute.xlu0 %76
    %80 = vset.pattern.permute.xlu0 0
    %81 = vperm.xlu0 %80, %v35
    %v82 = vpop.permute.xlu0 %81
    %85 = vset.pattern.permute.xlu0 0
    %86 = vperm.xlu0 %85, %v36
    %v87 = vpop.permute.xlu0 %86
    %90 = vset.pattern.permute.xlu0 0
    %91 = vperm.xlu0 %90, %v37
    %v92 = vpop.permute.xlu0 %91
    %95 = vset.pattern.permute.xlu0 0
    %96 = vperm.xlu0 %95, %v38
    %v97 = vpop.permute.xlu0 %96
    %100 = vset.pattern.permute.xlu0 0
    %101 = vperm.xlu0 %100, %v39
    %v102 = vpop.permute.xlu0 %101
    %105 = vset.pattern.permute.xlu0 0
    %106 = vperm.xlu0 %105, %v40
    %v107 = vpop.permute.xlu0 %106
    %110 = vset.pattern.permute.xlu0 0
    %111 = vperm.xlu0 %110, %v41
    %v112 = vpop.permute.xlu0 %111
    %115 = vset.pattern.permute.xlu0 0
    %116 = vperm.xlu0 %115, %v42
    %v117 = vpop.permute.xlu0 %116
    %120 = vset.pattern.permute.xlu0 0
    %121 = vperm.xlu0 %120, %v43
    %v122 = vpop.permute.xlu0 %121
    %v124 = vlaneseq
    %v125 = vshrl.u32 %v124, 7
    %v126 = vsub.s32 0, %v125
    %v127 = vrot.slane %v27, %v126
    %v128 = vmul.f32 %v47, %v127
    %v129 = vmul.f32 %v52, %v127
    %v130 = vmul.f32 %v57, %v127
    %v131 = vmul.f32 %v62, %v127
    %v132 = vmul.f32 %v67, %v127
    %v133 = vmul.f32 %v72, %v127
    %v134 = vmul.f32 %v77, %v127
    %v135 = vmul.f32 %v82, %v127
    %v136 = vmul.f32 %v87, %v127
    %v137 = vmul.f32 %v92, %v127
    %v138 = vmul.f32 %v97, %v127
    %v139 = vmul.f32 %v102, %v127
    %v140 = vmul.f32 %v107, %v127
    %v141 = vmul.f32 %v112, %v127
    %v142 = vmul.f32 %v117, %v127
    %v143 = vmul.f32 %v122, %v127
    %144 = vset.pattern.permute.xlu0 1
    %145 = vperm.xlu0 %144, %v28
    %v146 = vpop.permute.xlu0 %145
    %148 = vset.pattern.permute.xlu0 1
    %149 = vperm.xlu0 %148, %v29
    %v150 = vpop.permute.xlu0 %149
    %152 = vset.pattern.permute.xlu0 1
    %153 = vperm.xlu0 %152, %v30
    %v154 = vpop.permute.xlu0 %153
    %156 = vset.pattern.permute.xlu0 1
    %157 = vperm.xlu0 %156, %v31
    %v158 = vpop.permute.xlu0 %157
    %160 = vset.pattern.permute.xlu0 1
    %161 = vperm.xlu0 %160, %v32
    %v162 = vpop.permute.xlu0 %161
    %164 = vset.pattern.permute.xlu0 1
    %165 = vperm.xlu0 %164, %v33
    %v166 = vpop.permute.xlu0 %165
    %168 = vset.pattern.permute.xlu0 1
    %169 = vperm.xlu0 %168, %v34
    %v170 = vpop.permute.xlu0 %169
    %172 = vset.pattern.permute.xlu0 1
    %173 = vperm.xlu0 %172, %v35
    %v174 = vpop.permute.xlu0 %173
    %176 = vset.pattern.permute.xlu0 1
    %177 = vperm.xlu0 %176, %v36
    %v178 = vpop.permute.xlu0 %177
    %180 = vset.pattern.permute.xlu0 1
    %181 = vperm.xlu0 %180, %v37
    %v182 = vpop.permute.xlu0 %181
    %184 = vset.pattern.permute.xlu0 1
    %185 = vperm.xlu0 %184, %v38
    %v186 = vpop.permute.xlu0 %185
    %188 = vset.pattern.permute.xlu0 1
    %189 = vperm.xlu0 %188, %v39
    %v190 = vpop.permute.xlu0 %189
    %192 = vset.pattern.permute.xlu0 1
    %193 = vperm.xlu0 %192, %v40
    %v194 = vpop.permute.xlu0 %193
    %196 = vset.pattern.permute.xlu0 1
    %197 = vperm.xlu0 %196, %v41
    %v198 = vpop.permute.xlu0 %197
    %200 = vset.pattern.permute.xlu0 1
    %201 = vperm.xlu0 %200, %v42
    %v202 = vpop.permute.xlu0 %201
    %204 = vset.pattern.permute.xlu0 1
    %205 = vperm.xlu0 %204, %v43
    %v206 = vpop.permute.xlu0 %205
    %v208 = vlaneseq
    %v209 = vshrl.u32 %v208, 7
    %v210 = vsub.s32 1, %v209
    %v211 = vrot.slane %v27, %v210
    %v212 = vmul.f32 %v146, %v211
    %v213 = vmul.f32 %v150, %v211
    %v214 = vmul.f32 %v154, %v211
    %v215 = vmul.f32 %v158, %v211
    %v216 = vmul.f32 %v162, %v211
    %v217 = vmul.f32 %v166, %v211
    %v218 = vmul.f32 %v170, %v211
    %v219 = vmul.f32 %v174, %v211
    %v220 = vmul.f32 %v178, %v211
    %v221 = vmul.f32 %v182, %v211
    %v222 = vmul.f32 %v186, %v211
    %v223 = vmul.f32 %v190, %v211
    %v224 = vmul.f32 %v194, %v211
    %v225 = vmul.f32 %v198, %v211
    %v226 = vmul.f32 %v202, %v211
    %v227 = vmul.f32 %v206, %v211
    %v228 = vadd.f32 %v128, %v212
    %v229 = vadd.f32 %v129, %v213
    %v230 = vadd.f32 %v130, %v214
    %v231 = vadd.f32 %v131, %v215
    %v232 = vadd.f32 %v132, %v216
    %v233 = vadd.f32 %v133, %v217
    %v234 = vadd.f32 %v134, %v218
    %v235 = vadd.f32 %v135, %v219
    %v236 = vadd.f32 %v136, %v220
    %v237 = vadd.f32 %v137, %v221
    %v238 = vadd.f32 %v138, %v222
    %v239 = vadd.f32 %v139, %v223
    %v240 = vadd.f32 %v140, %v224
    %v241 = vadd.f32 %v141, %v225
    %v242 = vadd.f32 %v142, %v226
    %v243 = vadd.f32 %v143, %v227
    %v244 = vld [vmem:[%s2] sm:$0xff]
    %v245 = vld [vmem:[%s2 + $0x8] sm:$0xff]
    %v246 = vld [vmem:[%s2 + $0x10] sm:$0xff]
    %v247 = vld [vmem:[%s2 + $0x18] sm:$0xff]
    %v248 = vld [vmem:[%s2 + $0x20] sm:$0xff]
    %v249 = vld [vmem:[%s2 + $0x28] sm:$0xff]
    %v250 = vld [vmem:[%s2 + $0x30] sm:$0xff]
    %v251 = vld [vmem:[%s2 + $0x38] sm:$0xff]
    %v252 = vld [vmem:[%s2 + $0x40] sm:$0xff]
    %v253 = vld [vmem:[%s2 + $0x48] sm:$0xff]
    %v254 = vld [vmem:[%s2 + $0x50] sm:$0xff]
    %v255 = vld [vmem:[%s2 + $0x58] sm:$0xff]
    %v256 = vld [vmem:[%s2 + $0x60] sm:$0xff]
    %v257 = vld [vmem:[%s2 + $0x68] sm:$0xff]
    %v258 = vld [vmem:[%s2 + $0x70] sm:$0xff]
    %v259 = vld [vmem:[%s2 + $0x78] sm:$0xff]
    %261 = vset.pattern.permute.xlu0 0
    %262 = vperm.xlu0 %261, %v244
    %v263 = vpop.permute.xlu0 %262
    %266 = vset.pattern.permute.xlu0 0
    %267 = vperm.xlu0 %266, %v245
    %v268 = vpop.permute.xlu0 %267
    %271 = vset.pattern.permute.xlu0 0
    %272 = vperm.xlu0 %271, %v246
    %v273 = vpop.permute.xlu0 %272
    %276 = vset.pattern.permute.xlu0 0
    %277 = vperm.xlu0 %276, %v247
    %v278 = vpop.permute.xlu0 %277
    %281 = vset.pattern.permute.xlu0 0
    %282 = vperm.xlu0 %281, %v248
    %v283 = vpop.permute.xlu0 %282
    %286 = vset.pattern.permute.xlu0 0
    %287 = vperm.xlu0 %286, %v249
    %v288 = vpop.permute.xlu0 %287
    %291 = vset.pattern.permute.xlu0 0
    %292 = vperm.xlu0 %291, %v250
    %v293 = vpop.permute.xlu0 %292
    %296 = vset.pattern.permute.xlu0 0
    %297 = vperm.xlu0 %296, %v251
    %v298 = vpop.permute.xlu0 %297
    %301 = vset.pattern.permute.xlu0 0
    %302 = vperm.xlu0 %301, %v252
    %v303 = vpop.permute.xlu0 %302
    %306 = vset.pattern.permute.xlu0 0
    %307 = vperm.xlu0 %306, %v253
    %v308 = vpop.permute.xlu0 %307
    %311 = vset.pattern.permute.xlu0 0
    %312 = vperm.xlu0 %311, %v254
    %v313 = vpop.permute.xlu0 %312
    %316 = vset.pattern.permute.xlu0 0
    %317 = vperm.xlu0 %316, %v255
    %v318 = vpop.permute.xlu0 %317
    %321 = vset.pattern.permute.xlu0 0
    %322 = vperm.xlu0 %321, %v256
    %v323 = vpop.permute.xlu0 %322
    %326 = vset.pattern.permute.xlu0 0
    %327 = vperm.xlu0 %326, %v257
    %v328 = vpop.permute.xlu0 %327
    %331 = vset.pattern.permute.xlu0 0
    %332 = vperm.xlu0 %331, %v258
    %v333 = vpop.permute.xlu0 %332
    %336 = vset.pattern.permute.xlu0 0
    %337 = vperm.xlu0 %336, %v259
    %v338 = vpop.permute.xlu0 %337
    %v340 = vadd.f32 %v228, %v263
    %v341 = vadd.f32 %v229, %v268
    %v342 = vadd.f32 %v230, %v273
    %v343 = vadd.f32 %v231, %v278
    %v344 = vadd.f32 %v232, %v283
    %v345 = vadd.f32 %v233, %v288
    %v346 = vadd.f32 %v234, %v293
    %v347 = vadd.f32 %v235, %v298
    %v348 = vadd.f32 %v236, %v303
    %v349 = vadd.f32 %v237, %v308
    %v350 = vadd.f32 %v238, %v313
    %v351 = vadd.f32 %v239, %v318
    %v352 = vadd.f32 %v240, %v323
    %v353 = vadd.f32 %v241, %v328
    %v354 = vadd.f32 %v242, %v333
    %v355 = vadd.f32 %v243, %v338
    %v356 = vmax.f32 %v340, 0.0
    %v357 = vmax.f32 %v341, 0.0
    %v358 = vmax.f32 %v342, 0.0
    %v359 = vmax.f32 %v343, 0.0
    %v360 = vmax.f32 %v344, 0.0
    %v361 = vmax.f32 %v345, 0.0
    %v362 = vmax.f32 %v346, 0.0
    %v363 = vmax.f32 %v347, 0.0
    %v364 = vmax.f32 %v348, 0.0
    %v365 = vmax.f32 %v349, 0.0
    %v366 = vmax.f32 %v350, 0.0
    %v367 = vmax.f32 %v351, 0.0
    %v368 = vmax.f32 %v352, 0.0
    %v369 = vmax.f32 %v353, 0.0
    %v370 = vmax.f32 %v354, 0.0
    %v371 = vmax.f32 %v355, 0.0
    %v372 = vld [vmem:[%s3] sm:$0xff]
    %v373 = vld [vmem:[%s3 + $0x8] sm:$0xff]
    %v374 = vld [vmem:[%s3 + $0x10] sm:$0xff]
    %v375 = vld [vmem:[%s3 + $0x18] sm:$0xff]
    %v376 = vld [vmem:[%s3 + $0x20] sm:$0xff]
    %v377 = vld [vmem:[%s3 + $0x28] sm:$0xff]
    %v378 = vld [vmem:[%s3 + $0x30] sm:$0xff]
    %v379 = vld [vmem:[%s3 + $0x38] sm:$0xff]
    %v380 = vld [vmem:[%s3 + $0x40] sm:$0xff]
    %v381 = vld [vmem:[%s3 + $0x48] sm:$0xff]
    %v382 = vld [vmem:[%s3 + $0x50] sm:$0xff]
    %v383 = vld [vmem:[%s3 + $0x58] sm:$0xff]
    %v384 = vld [vmem:[%s3 + $0x60] sm:$0xff]
    %v385 = vld [vmem:[%s3 + $0x68] sm:$0xff]
    %v386 = vld [vmem:[%s3 + $0x70] sm:$0xff]
    %v387 = vld [vmem:[%s3 + $0x78] sm:$0xff]
    %v388 = vld [vmem:[%s4] sm:$0xff]
    %v389 = vld [vmem:[%s4 + $0x8] sm:$0xff]
    %v390 = vld [vmem:[%s4 + $0x10] sm:$0xff]
    %v391 = vld [vmem:[%s4 + $0x18] sm:$0xff]
    %v392 = vld [vmem:[%s4 + $0x20] sm:$0xff]
    %v393 = vld [vmem:[%s4 + $0x28] sm:$0xff]
    %v394 = vld [vmem:[%s4 + $0x30] sm:$0xff]
    %v395 = vld [vmem:[%s4 + $0x38] sm:$0xff]
    %v396 = vld [vmem:[%s4 + $0x40] sm:$0xff]
    %v397 = vld [vmem:[%s4 + $0x48] sm:$0xff]
    %v398 = vld [vmem:[%s4 + $0x50] sm:$0xff]
    %v399 = vld [vmem:[%s4 + $0x58] sm:$0xff]
    %v400 = vld [vmem:[%s4 + $0x60] sm:$0xff]
    %v401 = vld [vmem:[%s4 + $0x68] sm:$0xff]
    %v402 = vld [vmem:[%s4 + $0x70] sm:$0xff]
    %v403 = vld [vmem:[%s4 + $0x78] sm:$0xff]
    %405 = vset.pattern.permute.xlu0 0
    %406 = vperm.xlu0 %405, %v388
    %v407 = vpop.permute.xlu0 %406
    %410 = vset.pattern.permute.xlu0 0
    %411 = vperm.xlu0 %410, %v389
    %v412 = vpop.permute.xlu0 %411
    %415 = vset.pattern.permute.xlu0 0
    %416 = vperm.xlu0 %415, %v390
    %v417 = vpop.permute.xlu0 %416
    %420 = vset.pattern.permute.xlu0 0
    %421 = vperm.xlu0 %420, %v391
    %v422 = vpop.permute.xlu0 %421
    %425 = vset.pattern.permute.xlu0 0
    %426 = vperm.xlu0 %425, %v392
    %v427 = vpop.permute.xlu0 %426
    %430 = vset.pattern.permute.xlu0 0
    %431 = vperm.xlu0 %430, %v393
    %v432 = vpop.permute.xlu0 %431
    %435 = vset.pattern.permute.xlu0 0
    %436 = vperm.xlu0 %435, %v394
    %v437 = vpop.permute.xlu0 %436
    %440 = vset.pattern.permute.xlu0 0
    %441 = vperm.xlu0 %440, %v395
    %v442 = vpop.permute.xlu0 %441
    %445 = vset.pattern.permute.xlu0 0
    %446 = vperm.xlu0 %445, %v396
    %v447 = vpop.permute.xlu0 %446
    %450 = vset.pattern.permute.xlu0 0
    %451 = vperm.xlu0 %450, %v397
    %v452 = vpop.permute.xlu0 %451
    %455 = vset.pattern.permute.xlu0 0
    %456 = vperm.xlu0 %455, %v398
    %v457 = vpop.permute.xlu0 %456
    %460 = vset.pattern.permute.xlu0 0
    %461 = vperm.xlu0 %460, %v399
    %v462 = vpop.permute.xlu0 %461
    %465 = vset.pattern.permute.xlu0 0
    %466 = vperm.xlu0 %465, %v400
    %v467 = vpop.permute.xlu0 %466
    %470 = vset.pattern.permute.xlu0 0
    %471 = vperm.xlu0 %470, %v401
    %v472 = vpop.permute.xlu0 %471
    %475 = vset.pattern.permute.xlu0 0
    %476 = vperm.xlu0 %475, %v402
    %v477 = vpop.permute.xlu0 %476
    %480 = vset.pattern.permute.xlu0 0
    %481 = vperm.xlu0 %480, %v403
    %v482 = vpop.permute.xlu0 %481
    %484 = vmatprep.subr.mxu0 0.0
    %485 = vmatpush1.msra.mxu0 %v356
    %486 = vmatprep.subr.mxu0 0.0
    %487 = vmatpush1.msra.mxu0 %v357
    %488 = vmatprep.subr.mxu0 0.0
    %489 = vmatpush1.msra.mxu0 %v358
    %490 = vmatprep.subr.mxu0 0.0
    %491 = vmatpush1.msra.mxu0 %v359
    %492 = vmatprep.subr.mxu0 0.0
    %493 = vmatpush1.msra.mxu0 %v360
    %494 = vmatprep.subr.mxu0 0.0
    %495 = vmatpush1.msra.mxu0 %v361
    %496 = vmatprep.subr.mxu0 0.0
    %497 = vmatpush1.msra.mxu0 %v362
    %498 = vmatprep.subr.mxu0 0.0
    %499 = vmatpush1.msra.mxu0 %v363
    %500 = vmatprep.subr.mxu0 0.0
    %501 = vmatpush1.msra.mxu0 %v364
    %502 = vmatprep.subr.mxu0 0.0
    %503 = vmatpush1.msra.mxu0 %v365
    %504 = vmatprep.subr.mxu0 0.0
    %505 = vmatpush1.msra.mxu0 %v366
    %506 = vmatprep.subr.mxu0 0.0
    %507 = vmatpush1.msra.mxu0 %v367
    %508 = vmatprep.subr.mxu0 0.0
    %509 = vmatpush1.msra.mxu0 %v368
    %510 = vmatprep.subr.mxu0 0.0
    %511 = vmatpush1.msra.mxu0 %v369
    %512 = vmatprep.subr.mxu0 0.0
    %513 = vmatpush1.msra.mxu0 %v370
    %514 = vmatprep.subr.mxu0 0.0
    %515 = vmatpush1.msra.mxu0 %v371
    %516 = vmatprep.subr.mxu0 0.0
    %517 = vmatpush1.msra.mxu0 0.0
    %518 = vmatprep.subr.mxu0 0.0
    %519 = vmatpush1.msra.mxu0 0.0
    %520 = vmatprep.subr.mxu0 0.0
    %521 = vmatpush1.msra.mxu0 0.0
    %522 = vmatprep.subr.mxu0 0.0
    %523 = vmatpush1.msra.mxu0 0.0
    %524 = vmatprep.subr.mxu0 0.0
    %525 = vmatpush1.msra.mxu0 0.0
    %526 = vmatprep.subr.mxu0 0.0
    %527 = vmatpush1.msra.mxu0 0.0
    %528 = vmatprep.subr.mxu0 0.0
    %529 = vmatpush1.msra.mxu0 0.0
    %530 = vmatprep.subr.mxu0 0.0
    %531 = vmatpush1.msra.mxu0 0.0
    %532 = vmatprep.subr.mxu0 0.0
    %533 = vmatpush1.msra.mxu0 0.0
    %534 = vmatprep.subr.mxu0 0.0
    %535 = vmatpush1.msra.mxu0 0.0
    %536 = vmatprep.subr.mxu0 0.0
    %537 = vmatpush1.msra.mxu0 0.0
    %538 = vmatprep.subr.mxu0 0.0
    %539 = vmatpush1.msra.mxu0 0.0
    %540 = vmatprep.subr.mxu0 0.0
    %541 = vmatpush1.msra.mxu0 0.0
    %542 = vmatprep.subr.mxu0 0.0
    %543 = vmatpush1.msra.mxu0 0.0
    %544 = vmatprep.subr.mxu0 0.0
    %545 = vmatpush1.msra.mxu0 0.0
    %546 = vmatprep.subr.mxu0 0.0
    %547 = vmatpush1.msra.mxu0 0.0
    %548 = vmatprep.mubr.f32.mxu0 0.0
    %549 = vmatmul.mubr.f32.gmra.mrb[0].mxu0 %v372
    %v550 = vpop.f32.mrb[0].mxu0
    %v551 = vadd.f32 %v407, %v550
    %v552 = vpop.f32.mrb[0].mxu0
    %553 = vmatprep.mubr.f32.mxu0 0.0
    %554 = vmatmul.mubr.f32.gmra.mrb[0].mxu0 %v373
    %v555 = vpop.f32.mrb[0].mxu0
    %v556 = vadd.f32 %v412, %v555
    %v557 = vpop.f32.mrb[0].mxu0
    %558 = vmatprep.mubr.f32.mxu0 0.0
    %559 = vmatmul.mubr.f32.gmra.mrb[0].mxu0 %v374
    %v560 = vpop.f32.mrb[0].mxu0
    %v561 = vadd.f32 %v417, %v560
    %v562 = vpop.f32.mrb[0].mxu0
    %563 = vmatprep.mubr.f32.mxu0 0.0
    %564 = vmatmul.mubr.f32.gmra.mrb[0].mxu0 %v375
    %v565 = vpop.f32.mrb[0].mxu0
    %v566 = vadd.f32 %v422, %v565
    %v567 = vpop.f32.mrb[0].mxu0
    %568 = vmatprep.mubr.f32.mxu0 0.0
    %569 = vmatmul.mubr.f32.gmra.mrb[0].mxu0 %v376
    %v570 = vpop.f32.mrb[0].mxu0
    %v571 = vadd.f32 %v427, %v570
    %v572 = vpop.f32.mrb[0].mxu0
    %573 = vmatprep.mubr.f32.mxu0 0.0
    %574 = vmatmul.mubr.f32.gmra.mrb[0].mxu0 %v377
    %v575 = vpop.f32.mrb[0].mxu0
    %v576 = vadd.f32 %v432, %v575
    %v577 = vpop.f32.mrb[0].mxu0
    %578 = vmatprep.mubr.f32.mxu0 0.0
    %579 = vmatmul.mubr.f32.gmra.mrb[0].mxu0 %v378
    %v580 = vpop.f32.mrb[0].mxu0
    %v581 = vadd.f32 %v437, %v580
    %v582 = vpop.f32.mrb[0].mxu0
    %583 = vmatprep.mubr.f32.mxu0 0.0
    %584 = vmatmul.mubr.f32.gmra.mrb[0].mxu0 %v379
    %v585 = vpop.f32.mrb[0].mxu0
    %v586 = vadd.f32 %v442, %v585
    %v587 = vpop.f32.mrb[0].mxu0
    %588 = vmatprep.mubr.f32.mxu0 0.0
    %589 = vmatmul.mubr.f32.gmra.mrb[0].mxu0 %v380
    %v590 = vpop.f32.mrb[0].mxu0
    %v591 = vadd.f32 %v447, %v590
    %v592 = vpop.f32.mrb[0].mxu0
    %593 = vmatprep.mubr.f32.mxu0 0.0
    %594 = vmatmul.mubr.f32.gmra.mrb[0].mxu0 %v381
    %v595 = vpop.f32.mrb[0].mxu0
    %v596 = vadd.f32 %v452, %v595
    %v597 = vpop.f32.mrb[0].mxu0
    %598 = vmatprep.mubr.f32.mxu0 0.0
    %599 = vmatmul.mubr.f32.gmra.mrb[0].mxu0 %v382
    %v600 = vpop.f32.mrb[0].mxu0
    %v601 = vadd.f32 %v457, %v600
    %v602 = vpop.f32.mrb[0].mxu0
    %603 = vmatprep.mubr.f32.mxu0 0.0
    %604 = vmatmul.mubr.f32.gmra.mrb[0].mxu0 %v383
    %v605 = vpop.f32.mrb[0].mxu0
    %v606 = vadd.f32 %v462, %v605
    %v607 = vpop.f32.mrb[0].mxu0
    %608 = vmatprep.mubr.f32.mxu0 0.0
    %609 = vmatmul.mubr.f32.gmra.mrb[0].mxu0 %v384
    %v610 = vpop.f32.mrb[0].mxu0
    %v611 = vadd.f32 %v467, %v610
    %v612 = vpop.f32.mrb[0].mxu0
    %613 = vmatprep.mubr.f32.mxu0 0.0
    %614 = vmatmul.mubr.f32.gmra.mrb[0].mxu0 %v385
    %v615 = vpop.f32.mrb[0].mxu0
    %v616 = vadd.f32 %v472, %v615
    %v617 = vpop.f32.mrb[0].mxu0
    %618 = vmatprep.mubr.f32.mxu0 0.0
    %619 = vmatmul.mubr.f32.gmra.mrb[0].mxu0 %v386
    %v620 = vpop.f32.mrb[0].mxu0
    %v621 = vadd.f32 %v477, %v620
    %v622 = vpop.f32.mrb[0].mxu0
    %623 = vmatprep.mubr.f32.mxu0 0.0
    %624 = vmatmul.mubr.f32.gmra.mrb[0].mxu0 %v387
    %v625 = vpop.f32.mrb[0].mxu0
    %v626 = vadd.f32 %v482, %v625
    %v627 = vpop.f32.mrb[0].mxu0
    %628 = vdwg.mxu0
    %v629 = vmax.f32 %v551, 0.0
    %v630 = vmax.f32 %v556, 0.0
    %v631 = vmax.f32 %v561, 0.0
    %v632 = vmax.f32 %v566, 0.0
    %v633 = vmax.f32 %v571, 0.0
    %v634 = vmax.f32 %v576, 0.0
    %v635 = vmax.f32 %v581, 0.0
    %v636 = vmax.f32 %v586, 0.0
    %v637 = vmax.f32 %v591, 0.0
    %v638 = vmax.f32 %v596, 0.0
    %v639 = vmax.f32 %v601, 0.0
    %v640 = vmax.f32 %v606, 0.0
    %v641 = vmax.f32 %v611, 0.0
    %v642 = vmax.f32 %v616, 0.0
    %v643 = vmax.f32 %v621, 0.0
    %v644 = vmax.f32 %v626, 0.0
    %v645 = vld [vmem:[%s5] sm:$0xff]
    %v646 = vld [vmem:[%s6] sm:$0xff]
    %648 = vset.pattern.permute.xlu0 0
    %649 = vperm.xlu0 %648, %v646
    %v650 = vpop.permute.xlu0 %649
    %652 = vmatprep.subr.mxu0 0.0
    %653 = vmatpush1.msra.mxu0 %v629
    %654 = vmatprep.subr.mxu0 0.0
    %655 = vmatpush1.msra.mxu0 %v630
    %656 = vmatprep.subr.mxu0 0.0
    %657 = vmatpush1.msra.mxu0 %v631
    %658 = vmatprep.subr.mxu0 0.0
    %659 = vmatpush1.msra.mxu0 %v632
    %660 = vmatprep.subr.mxu0 0.0
    %661 = vmatpush1.msra.mxu0 %v633
    %662 = vmatprep.subr.mxu0 0.0
    %663 = vmatpush1.msra.mxu0 %v634
    %664 = vmatprep.subr.mxu0 0.0
    %665 = vmatpush1.msra.mxu0 %v635
    %666 = vmatprep.subr.mxu0 0.0
    %667 = vmatpush1.msra.mxu0 %v636
    %668 = vmatprep.subr.mxu0 0.0
    %669 = vmatpush1.msra.mxu0 %v637
    %670 = vmatprep.subr.mxu0 0.0
    %671 = vmatpush1.msra.mxu0 %v638
    %672 = vmatprep.subr.mxu0 0.0
    %673 = vmatpush1.msra.mxu0 %v639
    %674 = vmatprep.subr.mxu0 0.0
    %675 = vmatpush1.msra.mxu0 %v640
    %676 = vmatprep.subr.mxu0 0.0
    %677 = vmatpush1.msra.mxu0 %v641
    %678 = vmatprep.subr.mxu0 0.0
    %679 = vmatpush1.msra.mxu0 %v642
    %680 = vmatprep.subr.mxu0 0.0
    %681 = vmatpush1.msra.mxu0 %v643
    %682 = vmatprep.subr.mxu0 0.0
    %683 = vmatpush1.msra.mxu0 %v644
    %684 = vmatprep.subr.mxu0 0.0
    %685 = vmatpush1.msra.mxu0 0.0
    %686 = vmatprep.subr.mxu0 0.0
    %687 = vmatpush1.msra.mxu0 0.0
    %688 = vmatprep.subr.mxu0 0.0
    %689 = vmatpush1.msra.mxu0 0.0
    %690 = vmatprep.subr.mxu0 0.0
    %691 = vmatpush1.msra.mxu0 0.0
    %692 = vmatprep.subr.mxu0 0.0
    %693 = vmatpush1.msra.mxu0 0.0
    %694 = vmatprep.subr.mxu0 0.0
    %695 = vmatpush1.msra.mxu0 0.0
    %696 = vmatprep.subr.mxu0 0.0
    %697 = vmatpush1.msra.mxu0 0.0
    %698 = vmatprep.subr.mxu0 0.0
    %699 = vmatpush1.msra.mxu0 0.0
    %700 = vmatprep.subr.mxu0 0.0
    %701 = vmatpush1.msra.mxu0 0.0
    %702 = vmatprep.subr.mxu0 0.0
    %703 = vmatpush1.msra.mxu0 0.0
    %704 = vmatprep.subr.mxu0 0.0
    %705 = vmatpush1.msra.mxu0 0.0
    %706 = vmatprep.subr.mxu0 0.0
    %707 = vmatpush1.msra.mxu0 0.0
    %708 = vmatprep.subr.mxu0 0.0
    %709 = vmatpush1.msra.mxu0 0.0
    %710 = vmatprep.subr.mxu0 0.0
    %711 = vmatpush1.msra.mxu0 0.0
    %712 = vmatprep.subr.mxu0 0.0
    %713 = vmatpush1.msra.mxu0 0.0
    %714 = vmatprep.subr.mxu0 0.0
    %715 = vmatpush1.msra.mxu0 0.0
    %716 = vmatprep.mubr.f32.mxu0 0.0
    %717 = vmatmul.mubr.f32.gmra.mrb[0].mxu0 %v645
    %v718 = vpop.f32.mrb[0].mxu0
    %v719 = vadd.f32 %v650, %v718
    %v720 = vpop.f32.mrb[0].mxu0
    %721 = vdwg.mxu0
    %722 = vst [vmem:[#allocation2] sm:$0xff] %v719
    // Predicated region
    $region30: #{tpu_custom_call.1} parent=1 // pred_check
      _
    $region31: #{tpu_custom_call.1} parent=1 // pred_check_branch
      %724 = sbr.rel (0) target = $region33
    $region32: #{tpu_custom_call.1} parent=1 // pred_region
      %s726 = ssub.s32 128, 128
      %727 = vsyncadd [#allocation3], %s726
      %s729 = sshll.u32 [#allocation2], 4
      %s730 = int_to_ptr.vmem [resolvable:$true] %s729
      %732 = dma.vmem_to_hbm [thread:$0]  %s730, 128, %s7, [#allocation3]
    $region33: #{tpu_custom_call.1} parent=1 // pred_fallthru
      _
    // Predicated region
    $region34: #{tpu_custom_call.1} parent=1 // pred_check
      _
    $region35: #{tpu_custom_call.1} parent=1 // pred_check_branch
      %734 = sbr.rel (0) target = $region37
    $region36: #{tpu_custom_call.1} parent=1 // pred_region
      %735 = dma.done [#allocation3], 128
    $region37: #{tpu_custom_call.1} parent=1 // pred_fallthru
      _
    %736 = vsyncpa [#allocation3], 1

</llo_original>
